<compile_context>
chip_gen: v7x
topology: tpu7x:2x2x1
jax: 0.10.0
libtpu: 0.0.40
codegen_flags: <defaults>
</compile_context>

<pallas_src>
import functools
import math

import jax
import jax.numpy as jnp
from jax.experimental import pallas as pl
from jax.experimental.pallas import tpu as pltpu


def _layer_norm_kernel(alpha_ref, bias_ref, x_ref, o_ref, *, eps):
    """One (tm, D) row-tile. Reductions on XLU, normalize on VPU."""
    x = x_ref[...].astype(jnp.float32)
    d = x.shape[-1]

    mean = jnp.mean(x, axis=-1, keepdims=True)
    xc = x - mean
    # Unbiased std (matches torch.Tensor.std default: divide by N-1).
    # TODO(synk): D == 1 -> torch yields NaN (0/0); here var is forced to 0.
    var = jnp.sum(xc * xc, axis=-1, keepdims=True) * (1.0 / max(d - 1, 1))
    std = jnp.sqrt(var)

    alpha = alpha_ref[0].astype(jnp.float32)
    bias = bias_ref[0].astype(jnp.float32)

    # Per-row scale: exact divide only on the (tm, 1) column (cheap, keeps the
    # 1e-5 tolerance), then pure-VPU multiply/add over the full tile.
    scale = alpha / (std + eps)                       # (tm, 1)
    o_ref[...] = (xc * scale + bias).astype(o_ref.dtype)


def _choose_row_tile(m, d, dtype):
    """Byte/VMEM-budgeted row tile. Returns (tm, padded_m, vmem_limit_bytes)."""
    elem = jnp.dtype(dtype).itemsize
    # Sub-32-bit dtypes pack along sublanes: 16 rows/vreg for bf16, 32 for i8.
    pack = 32 if elem == 1 else (16 if elem == 2 else 8)

    try:
        vmem_cap = int(pltpu.get_tpu_info().vmem_capacity_bytes)
    except Exception:  # pragma: no cover - conservative default (v7x per-TC)
        vmem_cap = 64 << 20
    vmem_limit = min(vmem_cap * 3 // 4, 96 << 20)   # what we ask the compiler for
    budget = vmem_limit * 3 // 4                     # headroom for internal scratch

    # Pipelined footprint per step ~= 2x in + 2x out (double-buffered, elem
    # bytes) + ~2 f32 temps  ->  (4*elem + 8) * tm * d bytes.
    per_row_footprint = (4 * elem + 8) * d
    tm_vmem = max(pack, budget // per_row_footprint)
    # Keep the streamed HBM block itself in the 2-8 MiB sweet spot.
    tm_blk = max(pack, (8 << 20) // (elem * d))
    tm = max(pack, (min(tm_vmem, tm_blk) // pack) * pack)

    # Pad M to the packing granule, clamp the tile, then prefer >=2 grid steps
    # (megacore sharding on v7x, DMA/compute overlap everywhere).
    m_pad = -(-m // pack) * pack
    tm = min(tm, m_pad)
    if m_pad // tm < 2 and m_pad >= 2 * pack:
        tm = max(pack, ((m_pad // 2) // pack) * pack)
    m_pad = -(-m_pad // tm) * tm
    return tm, m_pad, vmem_limit


@functools.partial(jax.jit, static_argnames=("eps",))
def layer_normalisation(x, alpha, bias, *, eps=1e-6):
    """x: (..., D) -> (..., D); alpha, bias: shape (1,) scalar parameters."""
    orig_shape = x.shape
    d = orig_shape[-1]
    m = math.prod(orig_shape[:-1])

    tm, m_pad, vmem_limit = _choose_row_tile(m, d, x.dtype)

    x2d = x.reshape(m, d)
    if m_pad != m:
        x2d = jnp.pad(x2d, ((0, m_pad - m), (0, 0)))

    grid = (m_pad // tm,)
    elem = jnp.dtype(x.dtype).itemsize
    cost = pl.CostEstimate(
        flops=7 * m_pad * d,            # sub, square, 2 row-sums, scale, shift
        transcendentals=2 * m_pad,      # one sqrt + one per-row divide
        bytes_accessed=2 * m_pad * d * elem,
    )

    out2d = pl.pallas_call(
        functools.partial(_layer_norm_kernel, eps=float(eps)),
        out_shape=jax.ShapeDtypeStruct((m_pad, d), x.dtype),
        grid_spec=pltpu.PrefetchScalarGridSpec(
            num_scalar_prefetch=0,
            grid=grid,
            in_specs=[
                pl.BlockSpec(memory_space=pltpu.MemorySpace.SMEM),  # alpha (1,)
                pl.BlockSpec(memory_space=pltpu.MemorySpace.SMEM),  # bias  (1,)
                pl.BlockSpec((tm, d), lambda i: (i, 0)),            # x rows
            ],
            out_specs=pl.BlockSpec((tm, d), lambda i: (i, 0)),
        ),
        compiler_params=pltpu.CompilerParams(
            dimension_semantics=("parallel",),
            vmem_limit_bytes=int(vmem_limit),
        ),
        cost_estimate=cost,
    )(alpha, bias, x2d)

    if m_pad != m:
        out2d = out2d[:m]
    return out2d.reshape(orig_shape)


def _reference(x, alpha, bias, eps=1e-6):
    """Plain-JAX mirror of the PyTorch module (unbiased std)."""
    x = x.astype(jnp.float32)
    d = x.shape[-1]
    mean = jnp.mean(x, axis=-1, keepdims=True)
    xc = x - mean
    var = jnp.sum(xc * xc, axis=-1, keepdims=True) / max(d - 1, 1)
    std = jnp.sqrt(var)
    return alpha[0] * xc / (std + eps) + bias[0]


if __name__ == "__main__":
    key = jax.random.PRNGKey(0)
    k1, k2, k3 = jax.random.split(key, 3)

    # Module params (nn.Parameter(torch.ones(1)) / torch.zeros(1)); use
    # non-trivial values so the scalar scale/shift path is exercised.
    alpha = jnp.full((1,), 1.3, jnp.float32)
    bias = jnp.full((1,), -0.2, jnp.float32)

    # Case 1: lane-dense feature dim (the intended fast path).
    x1 = jax.random.normal(k1, (2, 8, 128), jnp.float32)
    out1 = jax.block_until_ready(layer_normalisation(x1, alpha, bias))
    assert out1.shape == x1.shape
    assert jnp.allclose(out1, _reference(x1, alpha, bias), atol=1e-5, rtol=1e-5)

    # Case 2: small, non-128-aligned feature dim (full-extent lane block).
    x2 = jax.random.normal(k2, (2, 8, 32), jnp.float32)
    out2 = jax.block_until_ready(layer_normalisation(x2, alpha, bias))
    assert jnp.allclose(out2, _reference(x2, alpha, bias), atol=1e-5, rtol=1e-5)

    # Case 3: leading dims that don't divide the row tile (exercises padding).
    x3 = jax.random.normal(k3, (3, 5, 128), jnp.float32)
    out3 = jax.block_until_ready(layer_normalisation(x3, alpha, bias))
    assert jnp.allclose(out3, _reference(x3, alpha, bias), atol=1e-5, rtol=1e-5)

    print("KERNEL_OK")
</pallas_src>

<mosaic_0001>
module attributes {stable_mosaic.version = 11 : i64} {
  func.func @_layer_norm_kernel(%arg0: i32, %arg1: memref<1xf32, #tpu.memory_space<smem>>, %arg2: memref<1xf32, #tpu.memory_space<smem>>, %arg3: memref<8x128xf32, #tpu.memory_space<vmem>>, %arg4: memref<8x128xf32, #tpu.memory_space<vmem>>) attributes {dimension_semantics = [#tpu.dimension_semantics<parallel>], iteration_bounds = array<i64: 2>, scalar_prefetch = 0 : i64, scratch_operands = 0 : i64, tpu.core_type = #tpu.core_type<tc>, window_params = [{transform_indices = @transform_0, window_bounds = array<i64: 1>}, {transform_indices = @transform_1, window_bounds = array<i64: 1>}, {transform_indices = @transform_2, window_bounds = array<i64: 8, 128>}, {transform_indices = @transform_3, window_bounds = array<i64: 8, 128>}]} {
    %c0 = arith.constant 0 : index
    %c0_0 = arith.constant 0 : index
    %0 = vector.load %arg3[%c0, %c0_0] : memref<8x128xf32, #tpu.memory_space<vmem>>, vector<8x128xf32>
    %cst = arith.constant dense<0.000000e+00> : vector<8xf32>
    %1 = vector.multi_reduction <add>, %0, %cst [1] : vector<8x128xf32> to vector<8xf32>
    %2 = vector.shape_cast %1 : vector<8xf32> to vector<8x1xf32>
    %cst_1 = arith.constant 1.280000e+02 : f32
    %3 = vector.broadcast %cst_1 : f32 to vector<8x1xf32>
    %4 = arith.divf %2, %3 : vector<8x1xf32>
    %5 = vector.broadcast %4 : vector<8x1xf32> to vector<8x128xf32>
    %6 = arith.subf %0, %5 : vector<8x128xf32>
    %7 = arith.mulf %6, %6 : vector<8x128xf32>
    %cst_2 = arith.constant dense<0.000000e+00> : vector<8xf32>
    %8 = vector.multi_reduction <add>, %7, %cst_2 [1] : vector<8x128xf32> to vector<8xf32>
    %9 = vector.shape_cast %8 : vector<8xf32> to vector<8x1xf32>
    %cst_3 = arith.constant 0.00787401571 : f32
    %10 = vector.broadcast %cst_3 : f32 to vector<8x1xf32>
    %11 = arith.mulf %9, %10 : vector<8x1xf32>
    %12 = math.sqrt %11 : vector<8x1xf32>
    %c0_4 = arith.constant 0 : index
    %13 = memref.load %arg1[%c0_4] : memref<1xf32, #tpu.memory_space<smem>>
    %c0_5 = arith.constant 0 : index
    %14 = memref.load %arg2[%c0_5] : memref<1xf32, #tpu.memory_space<smem>>
    %cst_6 = arith.constant 9.99999997E-7 : f32
    %15 = vector.broadcast %cst_6 : f32 to vector<8x1xf32>
    %16 = arith.addf %12, %15 : vector<8x1xf32>
    %17 = vector.broadcast %13 : f32 to vector<8x1xf32>
    %18 = arith.divf %17, %16 : vector<8x1xf32>
    %19 = vector.broadcast %18 : vector<8x1xf32> to vector<8x128xf32>
    %20 = arith.mulf %6, %19 : vector<8x128xf32>
    %21 = vector.broadcast %14 : f32 to vector<8x128xf32>
    %22 = arith.addf %20, %21 : vector<8x128xf32>
    %c0_7 = arith.constant 0 : index
    %c0_8 = arith.constant 0 : index
    %23 = vector.load %arg4[%c0_7, %c0_8] : memref<8x128xf32, #tpu.memory_space<vmem>>, vector<8x128xf32>
    tpu.vector_store %arg4[%c0_7, %c0_8], %22 {strides = array<i32>} : memref<8x128xf32, #tpu.memory_space<vmem>>, vector<8x128xf32>,
    return
  }
  func.func @transform_0(%arg0: i32) -> i32 {
    %c0_i32 = arith.constant 0 : i32
    %c0_i32_0 = arith.constant 0 : i32
    return %c0_i32 : i32
  }
  func.func @transform_1(%arg0: i32) -> i32 {
    %c0_i32 = arith.constant 0 : i32
    %c0_i32_0 = arith.constant 0 : i32
    return %c0_i32 : i32
  }
  func.func @transform_2(%arg0: i32) -> (i32, i32) {
    %c0_i32 = arith.constant 0 : i32
    %c0_i32_0 = arith.constant 0 : i32
    return %arg0, %c0_i32 : i32, i32
  }
  func.func @transform_3(%arg0: i32) -> (i32, i32) {
    %c0_i32 = arith.constant 0 : i32
    %c0_i32_0 = arith.constant 0 : i32
    return %arg0, %c0_i32 : i32, i32
  }
}

</mosaic_0001>

<llo_original>
// kernel: layer_normalisation.1
$region0: #{layer_normalisation.1}
  #allocation0 [shape = 'u32[]', space=smem, size = 0x4, offset = 0x4, fixed_abs, tag = 'smem constant byte address 0x4 - core index']
  #allocation1 [shape = 'u32[144,128]{1,0:T(1,128)}', space=vmem, size = 0x12000, scoped, tag = 'internal scratch']
  #allocation2 [shape = 'f32[1]{0:T(128)S(6)}', space=smem, size = 0x200, scoped, tag = 'scoped memory for layer_normalisation.1']
  #allocation3 [shape = 'f32[1]{0:T(128)S(6)}', space=smem, size = 0x200, scoped, tag = 'scoped memory for layer_normalisation.1']
  %s0 = inlined_call_operand.<no memory space> [shape: f32[1], index: 0, kind: input, shape index: {}]
  %s1 = inlined_call_operand.<no memory space> [shape: f32[1], index: 1, kind: input, shape index: {}]
  %s2 = inlined_call_operand.hbm [shape: f32[16,128], index: 2, kind: input, shape index: {}]
  %s3 = inlined_call_operand.hbm [shape: f32[16,128], index: 3, kind: output, shape index: {}]
  %s4 = sld [smem:[#allocation0]]
  $region49: #{layer_normalisation.1} parent=0
    _
  %s6 = ssub.s32 1, %s4
  %s7 = scalar_select 0, %s6, %s4
  %8 = sst [smem:[#allocation2]] %s0
  %9 = sst [smem:[#allocation3]] %s1
  $region1: #{layer_normalisation.1} parent=0
    #allocation4 [shape = 'u8[8192]{0}', space=vmem, size = 0x2000, scoped, tag = 'input window, operand 2']
    #allocation5 [shape = 's32[2]{0}', space=sflag, size = 0x8, scoped, tag = 'scoped memory for layer_normalisation.1']
    #allocation6 [shape = 's32[2]{0}', space=sflag, size = 0x8, scoped, tag = 'scoped memory for layer_normalisation.1']
    #allocation7 [shape = 'u8[8192]{0}', space=vmem, size = 0x2000, scoped, tag = 'output window, operand 0']
    %10 = vsyncpa [#allocation5], 0
    %s11 = scalar_lea.sflag [#allocation5], 1
    %12 = vsyncpa %s11, 0
    %13 = vsyncpa [#allocation6], 0
    %s14 = scalar_lea.sflag [#allocation6], 1
    %15 = vsyncpa %s14, 0
    loop: start=0, step=1, limit=4
    $region2: #{layer_normalisation.1} parent=1 // loop_pre_header
      _
    $region3: #{layer_normalisation.1} parent=1 // loop_header
      %s17 = sphi 0, %s21
      %p18 = scmp.ge.s32.totalorder %s17, 4
      %s25 = sphi 0, %s25
      %s27 = sphi 0, %s25
      %s28 = sphi 0, %s27
      %s42 = sphi 0, %s28
      %s46 = sphi 0, %s46
      %s48 = sphi 0, %s46
      %s49 = sphi 0, %s48
      %s63 = sphi 0, %s49
      %s69 = sphi 0, %s71
      %s72 = sphi 0, %s69
      %s73 = sphi 0, %s72
      %s89 = sphi 0, %s73
      %s95 = sphi 0, %s97
      %s98 = sphi 0, %s95
      %s99 = sphi 0, %s98
      %s115 = sphi 0, %s99
    $region4: #{layer_normalisation.1} parent=1 // loop_header_branch
      %20 = sbr.rel (%p18) target = $region8
    $region5: #{layer_normalisation.1} parent=1 // loop_body
      %s22 = ssub.s32 %s17, 1
      %s23 = ssub.s32 %s17, 2
      %s24 = sadd.s32 %s17, 1
      %s26 = sadd.s32 %s25, 1
      %p29 = scmp.eq.s32.totalorder %s17, 1
      %p30 = scmp.ne.s32.totalorder %s25, %s27
      %p31 = scmp.eq.s32.totalorder %s17, 0
      %p32 = por %p30, %p31
      %p33 = scmp.ne.s32.totalorder %s25, %s27
      %p34 = scmp.eq.s32.totalorder %s22, 1
      %p35 = por %p33, %p34
      %p36 = scmp.ne.s32.totalorder %s27, %s28
      %p37 = scmp.eq.s32.totalorder %s22, 0
      %p38 = por %p36, %p37
      %p39 = scmp.ne.s32.totalorder %s27, %s28
      %p40 = scmp.eq.s32.totalorder %s23, 1
      %p41 = por %p39, %p40
      %p43 = scmp.ne.s32.totalorder %s28, %s42
      %p44 = scmp.eq.s32.totalorder %s23, 0
      %p45 = por %p43, %p44
      %s47 = sadd.s32 %s46, 1
      %p50 = scmp.eq.s32.totalorder %s17, 1
      %p51 = scmp.ne.s32.totalorder %s46, %s48
      %p52 = scmp.eq.s32.totalorder %s17, 0
      %p53 = por %p51, %p52
      %p54 = scmp.ne.s32.totalorder %s46, %s48
      %p55 = scmp.eq.s32.totalorder %s22, 1
      %p56 = por %p54, %p55
      %p57 = scmp.ne.s32.totalorder %s48, %s49
      %p58 = scmp.eq.s32.totalorder %s22, 0
      %p59 = por %p57, %p58
      %p60 = scmp.ne.s32.totalorder %s48, %s49
      %p61 = scmp.eq.s32.totalorder %s23, 1
      %p62 = por %p60, %p61
      %p64 = scmp.ne.s32.totalorder %s49, %s63
      %p65 = scmp.eq.s32.totalorder %s23, 0
      %p66 = por %p64, %p65
      %s67 = ssub.s32 %s17, %s24
      %p68 = scmp.eq.s32.totalorder %s67, 0
      %s70 = sadd.s32 %s69, 1
      %s71 = scalar_select %p68, %s69, %s70
      %p74 = pneg %p68
      %p75 = scmp.eq.s32.totalorder %s17, 1
      %p76 = por %p74, %p75
      %p77 = scmp.ne.s32.totalorder %s69, %s72
      %p78 = scmp.eq.s32.totalorder %s17, 0
      %p79 = por %p77, %p78
      %p80 = scmp.ne.s32.totalorder %s69, %s72
      %p81 = scmp.eq.s32.totalorder %s22, 1
      %p82 = por %p80, %p81
      %p83 = scmp.ne.s32.totalorder %s72, %s73
      %p84 = scmp.eq.s32.totalorder %s22, 0
      %p85 = por %p83, %p84
      %p86 = scmp.ne.s32.totalorder %s72, %s73
      %p87 = scmp.eq.s32.totalorder %s23, 1
      %p88 = por %p86, %p87
      %p90 = scmp.ne.s32.totalorder %s73, %s89
      %p91 = scmp.eq.s32.totalorder %s23, 0
      %p92 = por %p90, %p91
      %s93 = ssub.s32 %s17, %s24
      %p94 = scmp.eq.s32.totalorder %s93, 0
      %s96 = sadd.s32 %s95, 1
      %s97 = scalar_select %p94, %s95, %s96
      %p100 = pneg %p94
      %p101 = scmp.eq.s32.totalorder %s17, 1
      %p102 = por %p100, %p101
      %p103 = scmp.ne.s32.totalorder %s95, %s98
      %p104 = scmp.eq.s32.totalorder %s17, 0
      %p105 = por %p103, %p104
      %p106 = scmp.ne.s32.totalorder %s95, %s98
      %p107 = scmp.eq.s32.totalorder %s22, 1
      %p108 = por %p106, %p107
      %p109 = scmp.ne.s32.totalorder %s98, %s99
      %p110 = scmp.eq.s32.totalorder %s22, 0
      %p111 = por %p109, %p110
      %p112 = scmp.ne.s32.totalorder %s98, %s99
      %p113 = scmp.eq.s32.totalorder %s23, 1
      %p114 = por %p112, %p113
      %p116 = scmp.ne.s32.totalorder %s99, %s115
      %p117 = scmp.eq.s32.totalorder %s23, 0
      %p118 = por %p116, %p117
      %p119 = scmp.le.s32.totalorder 1, %s17
      %p120 = scmp.lt.s32.totalorder %s17, 3
      %p121 = pnand %p119, %p120
      %p122 = pneg %p121
      // Predicated region
      $region9: #{layer_normalisation.1} parent=5 // pred_check
        _
      $region10: #{layer_normalisation.1} parent=5 // pred_check_branch
        %124 = sbr.rel (%p121) target = $region12
      $region11: #{layer_normalisation.1} parent=5 // pred_region
        %s125 = ssub.s32 %s17, 1
        // Predicated region
        $region13: #{layer_normalisation.1} parent=11 // pred_check
          %p126 = pneg %p38
        $region14: #{layer_normalisation.1} parent=11 // pred_check_branch
          %128 = sbr.rel (%p126) target = $region16
        $region15: #{layer_normalisation.1} parent=11 // pred_region
          _
        $region16: #{layer_normalisation.1} parent=11 // pred_fallthru
          _
        // Predicated region
        $region17: #{layer_normalisation.1} parent=11 // pred_check
          %p129 = pneg %p59
        $region18: #{layer_normalisation.1} parent=11 // pred_check_branch
          %131 = sbr.rel (%p129) target = $region20
        $region19: #{layer_normalisation.1} parent=11 // pred_region
          _
        $region20: #{layer_normalisation.1} parent=11 // pred_fallthru
          _
      $region12: #{layer_normalisation.1} parent=5 // pred_fallthru
        _
      %p132 = scmp.lt.s32.totalorder %s17, 2
      // Predicated region
      $region21: #{layer_normalisation.1} parent=5 // pred_check
        %p133 = pneg %p132
      $region22: #{layer_normalisation.1} parent=5 // pred_check_branch
        %135 = sbr.rel (%p133) target = $region24
      $region23: #{layer_normalisation.1} parent=5 // pred_region
        // Predicated region
        $region25: #{layer_normalisation.1} parent=23 // pred_check
          %p136 = pneg %p79
        $region26: #{layer_normalisation.1} parent=23 // pred_check_branch
          %138 = sbr.rel (%p136) target = $region28
        $region27: #{layer_normalisation.1} parent=23 // pred_region
          %s139 = sand.u32 %s69, 1
          %s140 = scalar_lea.sflag [#allocation5], %s139
          %s141 = sand.u32 %s69, 1
          %s142 = smul.addr %s141, 8
          %s143 = scalar_lea.vmem [#allocation4], %s142
          %s145 = ssub.s32 128, 128
          %146 = vsyncadd %s140, %s145
          %s147 = smul.addr %s17, 128
          %s148 = scalar_lea.hbm %s2, %s147
          %s150 = sshll.u32 %s143, 4
          %s151 = int_to_ptr.vmem [resolvable:$true] %s150
          %153 = dma.hbm_to_vmem [thread:$0]  %s148, 128, %s151, %s140
        $region28: #{layer_normalisation.1} parent=23 // pred_fallthru
          _
      $region24: #{layer_normalisation.1} parent=5 // pred_fallthru
        _
      %p154 = scmp.le.s32.totalorder 1, %s17
      %p155 = scmp.lt.s32.totalorder %s17, 3
      %p156 = pnand %p154, %p155
      %p157 = pneg %p156
      // Predicated region
      $region29: #{layer_normalisation.1} parent=5 // pred_check
        _
      $region30: #{layer_normalisation.1} parent=5 // pred_check_branch
        %159 = sbr.rel (%p156) target = $region32
      $region31: #{layer_normalisation.1} parent=5 // pred_region
        %s160 = ssub.s32 %s17, 1
        %s161 = sand.u32 %s72, 1
        %s162 = scalar_lea.sflag [#allocation5], %s161
        %s163 = sand.u32 %s72, 1
        %s164 = smul.addr %s163, 8
        %s165 = scalar_lea.vmem [#allocation4], %s164
        // Predicated region
        $region33: #{layer_normalisation.1} parent=31 // pred_check
          %p166 = pneg %p85
        $region34: #{layer_normalisation.1} parent=31 // pred_check_branch
          %168 = sbr.rel (%p166) target = $region36
        $region35: #{layer_normalisation.1} parent=31 // pred_region
          %169 = dma.done %s162, 128
        $region36: #{layer_normalisation.1} parent=31 // pred_fallthru
          _
        %p170 = pneg %p38
        %p171 = pneg %p35
        %p172 = pneg %p59
        %p173 = pneg %p56
        %s174 = sand.u32 %s72, 1
        %s175 = scalar_lea.sflag [#allocation5], %s174
        %s176 = sand.u32 %s72, 1
        %s177 = smul.addr %s176, 8
        %s178 = scalar_lea.vmem [#allocation4], %s177
        %p179 = pneg %p85
        %p180 = pneg %p82
        %p181 = pneg %p111
        %p182 = pneg %p108
        %s183 = sand.u32 %s98, 1
        %s184 = scalar_lea.sflag [#allocation6], %s183
        %s185 = sand.u32 %s98, 1
        %s186 = smul.addr %s185, 8
        %s187 = scalar_lea.vmem [#allocation7], %s186
        %v188 = vld [vmem:[%s165] sm:$0xff]
        %189 = vadd.xlane.f32.xlu0 %v188
        %v190 = vpop.xlane.xlu0 %189
        %v191 = vrcp.pop 128.0
        %v192 = vmul.f32 %v190, %v191
        %v193 = vsub.f32 %v188, %v192
        %v194 = vmul.f32 %v193, %v193
        %195 = vadd.xlane.f32.xlu0 %v194
        %v196 = vpop.xlane.xlu0 %195
        %v197 = vmul.f32 %v196, 0.007874016
        %v198 = vrsqrt.pop %v197
        %v199 = vmul.f32 %v197, %v198
        %vm200 = vcmp.eq.f32.partialorder %v197, inf
        %v201 = vsel %vm200, %v197, %v199
        %vm202 = vcmp.eq.f32.partialorder %v197, 0.0
        %v203 = vand.u32 %v197, 2147483648
        %v204 = vsel %vm202, %v203, %v201
        %s205 = sld [smem:[#allocation2]]
        %s206 = sld [smem:[#allocation3]]
        %v207 = vadd.f32 %v204, 1e-06
        %v208 = vstv %s205
        %v209 = vrcp.pop %v207
        %v210 = vmul.f32 %v208, %v209
        %v211 = vmul.f32 %v193, %v210
        %v212 = vstv %s206
        %v213 = vadd.f32 %v211, %v212
        %214 = vst [vmem:[%s187] sm:$0xff] %v213
        %s215 = sand.u32 %s98, 1
        %s216 = scalar_lea.sflag [#allocation6], %s215
        %s217 = sand.u32 %s98, 1
        %s218 = smul.addr %s217, 8
        %s219 = scalar_lea.vmem [#allocation7], %s218
        // Predicated region
        $region37: #{layer_normalisation.1} parent=31 // pred_check
          %p220 = pneg %p108
        $region38: #{layer_normalisation.1} parent=31 // pred_check_branch
          %222 = sbr.rel (%p220) target = $region40
        $region39: #{layer_normalisation.1} parent=31 // pred_region
          %s224 = ssub.s32 128, 128
          %225 = vsyncadd %s216, %s224
          %s226 = smul.addr %s22, 128
          %s227 = scalar_lea.hbm %s3, %s226
          %s229 = sshll.u32 %s219, 4
          %s230 = int_to_ptr.vmem [resolvable:$true] %s229
          %232 = dma.vmem_to_hbm [thread:$0]  %s230, 128, %s227, %s216
        $region40: #{layer_normalisation.1} parent=31 // pred_fallthru
          _
      $region32: #{layer_normalisation.1} parent=5 // pred_fallthru
        _
      %p233 = scmp.le.s32.totalorder 2, %s17
      // Predicated region
      $region41: #{layer_normalisation.1} parent=5 // pred_check
        %p234 = pneg %p233
      $region42: #{layer_normalisation.1} parent=5 // pred_check_branch
        %236 = sbr.rel (%p234) target = $region44
      $region43: #{layer_normalisation.1} parent=5 // pred_region
        %s237 = ssub.s32 %s17, 2
        // Predicated region
        $region45: #{layer_normalisation.1} parent=43 // pred_check
          %p238 = pneg %p114
        $region46: #{layer_normalisation.1} parent=43 // pred_check_branch
          %240 = sbr.rel (%p238) target = $region48
        $region47: #{layer_normalisation.1} parent=43 // pred_region
          %s241 = sand.u32 %s99, 1
          %s242 = scalar_lea.sflag [#allocation6], %s241
          %s243 = sand.u32 %s99, 1
          %s244 = smul.addr %s243, 8
          %s245 = scalar_lea.vmem [#allocation7], %s244
          %246 = dma.done %s242, 128
        $region48: #{layer_normalisation.1} parent=43 // pred_fallthru
          _
      $region44: #{layer_normalisation.1} parent=5 // pred_fallthru
        _
    $region6: #{layer_normalisation.1} parent=1 // loop_footer
      %s21 = sadd.s32 1, %s17
    $region7: #{layer_normalisation.1} parent=1 // loop_footer_branch
      %16 = sbr.rel target = $region3
    $region8: #{layer_normalisation.1} parent=1 // loop_exit
      _
    %247 = vsyncpa [#allocation5], 1
    %s248 = scalar_lea.sflag [#allocation5], 1
    %249 = vsyncpa %s248, 1
    %250 = vsyncpa [#allocation6], 1
    %s251 = scalar_lea.sflag [#allocation6], 1
    %252 = vsyncpa %s251, 1

</llo_original>
